<compile_context>
chip_gen: v5e
topology: v5e:2x2
jax: 0.10.0
libtpu: 0.0.40
codegen_flags: <defaults>
</compile_context>

<pallas_src>
import functools

import jax
import jax.numpy as jnp
from jax.experimental import pallas as pl
from jax.experimental.pallas import tpu as pltpu

_EPS = 1e-5


def _ln_folded_kernel(x_ref, w_ref, b_ref, g_ref, o_ref, *, c, bf16_affine):
    """Lane-folded path: each VMEM row packs (128 // c) original rows.

    g_ref is a (128, 128) block-diagonal ones matrix; a single MXU matmul
    produces the per-original-row (per-c-lane-group) sums, already broadcast
    across each group's lanes, so the rest is plain lane-wise VPU work.
    """
    x32 = x_ref[...].astype(jnp.float32)
    g = g_ref[...]
    inv_c = 1.0 / float(c)
    # Segmented sums via the (otherwise idle) MXU.
    s1 = jnp.dot(x32, g, preferred_element_type=jnp.float32)
    s2 = jnp.dot(x32 * x32, g, preferred_element_type=jnp.float32)
    mu = s1 * inv_c
    var = jnp.maximum(s2 * inv_c - mu * mu, 0.0)   # clamp: cancellation guard
    inv = jax.lax.rsqrt(var + _EPS)                # EUP slot (free-ish)
    if bf16_affine:
        xa = x_ref[...]                            # native bf16, no upcast
        y = (xa - mu.astype(xa.dtype)) * inv.astype(xa.dtype) * w_ref[...] + b_ref[...]
    else:
        y = (x32 - mu) * inv * w_ref[...] + b_ref[...]
    o_ref[...] = y.astype(o_ref.dtype)


def _ln_plain_kernel(x_ref, w_ref, b_ref, o_ref, *, c, bf16_affine):
    """Fallback path: rows on sublanes, C on lanes (used when folding doesn't apply)."""
    x32 = x_ref[...].astype(jnp.float32)
    inv_c = 1.0 / float(c)
    # Single-pass statistics: the two cross-lane reductions are independent.
    s1 = jnp.sum(x32, axis=-1, keepdims=True)
    s2 = jnp.sum(x32 * x32, axis=-1, keepdims=True)
    mu = s1 * inv_c
    var = jnp.maximum(s2 * inv_c - mu * mu, 0.0)
    inv = jax.lax.rsqrt(var + _EPS)
    if bf16_affine:
        xa = x_ref[...]
        y = (xa - mu.astype(xa.dtype)) * inv.astype(xa.dtype) * w_ref[...] + b_ref[...]
    else:
        y = (x32 - mu) * inv * w_ref[...] + b_ref[...]
    o_ref[...] = y.astype(o_ref.dtype)


def _chip_traits():
    """(num_tensorcores, has_bf16_vpu) from the default device; conservative fallback."""
    try:
        kind = (jax.devices()[0].device_kind or "").lower()
    except Exception:
        kind = ""
    is_v7x = "7" in kind          # v7x: 2 TensorCores per chip
    is_v5e = "v5" in kind         # v5e: no bf16 VPU
    return (2 if is_v7x else 1), (not is_v5e)


def _choose_tile_rows(rows, c, dtype, *, num_tensorcores=1, target_block_bytes=8 << 20):
    """Pick the row tile: ~8 MiB blocks, multiple of 16 rows (or the full extent)."""
    itemsize = jnp.dtype(dtype).itemsize
    row_bytes = max(1, c * itemsize)
    # Whole problem fits one target-sized block on a single-TC chip: one step,
    # block spans the full row extent (always a legal layout, no masked tail).
    if num_tensorcores <= 1 and rows * row_bytes <= target_block_bytes:
        return rows
    t = max(1, target_block_bytes // row_bytes)
    if num_tensorcores > 1:
        # Keep >= 2 blocks per TensorCore so ("parallel",) sharding has work.
        t = min(t, pl.cdiv(rows, 2 * num_tensorcores))
    t = max(16, (t // 16) * 16)        # sublane-friendly for f32 and bf16
    return min(t, rows)


def withbias_layernorm(x, weight, bias, *, tile_rows=None, vmem_limit_bytes=None):
    """LayerNorm over the last axis with affine weight/bias (eps=1e-5)."""
    orig_shape = x.shape
    C = int(orig_shape[-1])
    rows = 1
    for d in orig_shape[:-1]:
        rows *= int(d)

    num_tc, has_bf16_vpu = _chip_traits()
    bf16_affine = bool(x.dtype == jnp.bfloat16 and has_bf16_vpu)
    affine_dtype = jnp.bfloat16 if bf16_affine else jnp.float32

    # Row -> lane folding: pack `fold` consecutive rows into one 128-lane row
    # when C < 128 divides 128 and the row count cooperates (free, contiguous).
    fold = 1
    if C < 128 and 128 % C == 0:
        f = 128 // C
        if rows >= f and rows % f == 0:
            fold = f

    rows_eff = rows // fold
    c_eff = C * fold
    x2 = x.reshape(rows_eff, c_eff)                     # contiguous reshape: free

    w1 = weight.reshape(1, C).astype(affine_dtype)      # pre-cast once, host side
    b1 = bias.reshape(1, C).astype(affine_dtype)
    if fold > 1:
        w2 = jnp.tile(w1, (1, fold))
        b2 = jnp.tile(b1, (1, fold))
        grp = jnp.arange(c_eff, dtype=jnp.int32) // C
        g = (grp[:, None] == grp[None, :]).astype(jnp.float32)   # block-diag ones
    else:
        w2, b2, g = w1, b1, None

    if tile_rows is None:
        tile_rows = _choose_tile_rows(rows_eff, c_eff, x.dtype, num_tensorcores=num_tc)
    tile_rows = int(tile_rows)
    grid = pl.cdiv(rows_eff, tile_rows)   # no host-side padding: tail rows masked

    itemsize = jnp.dtype(x.dtype).itemsize
    block_bytes = tile_rows * c_eff * itemsize
    if vmem_limit_bytes is None:
        resident = (2 * c_eff * jnp.dtype(affine_dtype).itemsize
                    + (c_eff * c_eff * 4 if fold > 1 else 0))
        # 2x double-buffered input + 2x output blocks + resident operands + slack.
        vmem_limit_bytes = max(4 * block_bytes + 2 * resident + (8 << 20), 32 << 20)

    x_spec = pl.BlockSpec((tile_rows, c_eff), lambda i: (i, 0))
    wb_spec = pl.BlockSpec((1, c_eff), lambda i: (0, 0))          # resident
    out_spec = pl.BlockSpec((tile_rows, c_eff), lambda i: (i, 0))

    if fold > 1:
        kernel = functools.partial(_ln_folded_kernel, c=C, bf16_affine=bf16_affine)
        in_specs = [x_spec, wb_spec, wb_spec,
                    pl.BlockSpec((c_eff, c_eff), lambda i: (0, 0))]   # G: resident
        args = (x2, w2, b2, g)
    else:
        kernel = functools.partial(_ln_plain_kernel, c=C, bf16_affine=bf16_affine)
        in_specs = [x_spec, wb_spec, wb_spec]
        args = (x2, w2, b2)

    out = pl.pallas_call(
        kernel,
        out_shape=jax.ShapeDtypeStruct((rows_eff, c_eff), x.dtype),
        grid_spec=pltpu.PrefetchScalarGridSpec(
            num_scalar_prefetch=0,
            grid=(grid,),
            in_specs=in_specs,
            out_specs=out_spec,
        ),
        compiler_params=pltpu.CompilerParams(
            dimension_semantics=("parallel",),     # shards rows across v7x TCs
            vmem_limit_bytes=int(vmem_limit_bytes),
        ),
    )(*args)

    return out.reshape(orig_shape)


def _reference(x, weight, bias):
    x = x.astype(jnp.float32)
    mu = jnp.mean(x, axis=-1, keepdims=True)
    var = jnp.mean((x - mu) ** 2, axis=-1, keepdims=True)   # unbiased=False
    return (x - mu) / jnp.sqrt(var + _EPS) * weight.astype(jnp.float32) \
        + bias.astype(jnp.float32)


if __name__ == "__main__":
    key = jax.random.PRNGKey(0)

    # normalized_shape = (32,); channels-last input as the module expects.
    C = 32
    weight = jnp.ones((C,), dtype=jnp.float32)   # matches module __init__
    bias = jnp.zeros((C,), dtype=jnp.float32)

    # Main example: (B, H, W, C) = (2, 16, 16, 32) -> rows = 512, folded to (128, 128).
    x = jax.random.normal(key, (2, 16, 16, C), dtype=jnp.float32)
    y = jax.block_until_ready(withbias_layernorm(x, weight, bias))
    ref = _reference(x, weight, bias)
    assert jnp.allclose(y, ref, atol=5e-4, rtol=5e-4), "mismatch on main shape"

    # Folded path with an explicit tile that leaves a masked tail block (grid=3).
    y_t = jax.block_until_ready(withbias_layernorm(x, weight, bias, tile_rows=48))
    assert jnp.allclose(y_t, ref, atol=5e-4, rtol=5e-4), "mismatch on folded tail"

    # Ragged row count (rows = 63, not divisible by 128//C) -> plain fallback path.
    x2 = jax.random.normal(jax.random.PRNGKey(1), (7, 9, C), dtype=jnp.float32)
    y2 = jax.block_until_ready(withbias_layernorm(x2, weight, bias))
    ref2 = _reference(x2, weight, bias)
    assert jnp.allclose(y2, ref2, atol=5e-4, rtol=5e-4), "mismatch on ragged shape"

    # bf16 input: stats stay f32; affine runs in bf16 on chips with a bf16 VPU.
    xb = jax.random.normal(jax.random.PRNGKey(2), (2, 16, 16, C), dtype=jnp.bfloat16)
    wb = jax.random.normal(jax.random.PRNGKey(3), (C,), dtype=jnp.float32) * 0.5 + 1.0
    bb = jax.random.normal(jax.random.PRNGKey(4), (C,), dtype=jnp.float32) * 0.1
    yb = jax.block_until_ready(withbias_layernorm(xb, wb, bb))
    refb = _reference(xb, wb, bb)
    assert jnp.allclose(yb.astype(jnp.float32), refb, atol=5e-2, rtol=5e-2), \
        "mismatch on bf16 input"

    print("KERNEL_OK")
</pallas_src>

<mosaic_0001>
module attributes {stable_mosaic.version = 11 : i64} {
  func.func @_ln_folded_kernel(%arg0: i32, %arg1: memref<128x128xf32, #tpu.memory_space<vmem>>, %arg2: memref<1x128xf32, #tpu.memory_space<vmem>>, %arg3: memref<1x128xf32, #tpu.memory_space<vmem>>, %arg4: memref<128x128xf32, #tpu.memory_space<vmem>>, %arg5: memref<128x128xf32, #tpu.memory_space<vmem>>) attributes {dimension_semantics = [#tpu.dimension_semantics<parallel>], iteration_bounds = array<i64: 1>, scalar_prefetch = 0 : i64, scratch_operands = 0 : i64, tpu.core_type = #tpu.core_type<tc>, window_params = [{transform_indices = @transform_0, window_bounds = array<i64: 128, 128>}, {pipeline_mode = #tpu.pipeline_mode<synchronous>, transform_indices = @transform_1, window_bounds = array<i64: 1, 128>}, {pipeline_mode = #tpu.pipeline_mode<synchronous>, transform_indices = @transform_2, window_bounds = array<i64: 1, 128>}, {pipeline_mode = #tpu.pipeline_mode<synchronous>, transform_indices = @transform_3, window_bounds = array<i64: 128, 128>}, {transform_indices = @transform_4, window_bounds = array<i64: 128, 128>}]} {
    %c0 = arith.constant 0 : index
    %c0_0 = arith.constant 0 : index
    %0 = vector.load %arg1[%c0, %c0_0] : memref<128x128xf32, #tpu.memory_space<vmem>>, vector<128x128xf32>
    %c0_1 = arith.constant 0 : index
    %c0_2 = arith.constant 0 : index
    %1 = vector.load %arg4[%c0_1, %c0_2] : memref<128x128xf32, #tpu.memory_space<vmem>>, vector<128x128xf32>
    %cst = arith.constant dense<0.000000e+00> : vector<128x128xf32>
    %2 = tpu.matmul %0, %1, %cst {dimension_numbers = #tpu.dot_dimension_numbers<[1], [0], [0], [1], [0, 0, 1, 1], [], []>} : vector<128x128xf32>, vector<128x128xf32>, vector<128x128xf32> -> vector<128x128xf32>
    %3 = arith.mulf %0, %0 : vector<128x128xf32>
    %cst_3 = arith.constant dense<0.000000e+00> : vector<128x128xf32>
    %4 = tpu.matmul %3, %1, %cst_3 {dimension_numbers = #tpu.dot_dimension_numbers<[1], [0], [0], [1], [0, 0, 1, 1], [], []>} : vector<128x128xf32>, vector<128x128xf32>, vector<128x128xf32> -> vector<128x128xf32>
    %cst_4 = arith.constant 3.125000e-02 : f32
    %5 = vector.broadcast %cst_4 : f32 to vector<128x128xf32>
    %6 = arith.mulf %2, %5 : vector<128x128xf32>
    %cst_5 = arith.constant 3.125000e-02 : f32
    %7 = vector.broadcast %cst_5 : f32 to vector<128x128xf32>
    %8 = arith.mulf %4, %7 : vector<128x128xf32>
    %9 = arith.mulf %6, %6 : vector<128x128xf32>
    %10 = arith.subf %8, %9 : vector<128x128xf32>
    %cst_6 = arith.constant 0.000000e+00 : f32
    %11 = vector.broadcast %cst_6 : f32 to vector<128x128xf32>
    %12 = arith.maximumf %10, %11 : vector<128x128xf32>
    %cst_7 = arith.constant 9.99999974E-6 : f32
    %13 = vector.broadcast %cst_7 : f32 to vector<128x128xf32>
    %14 = arith.addf %12, %13 : vector<128x128xf32>
    %15 = math.rsqrt %14 : vector<128x128xf32>
    %16 = arith.subf %0, %6 : vector<128x128xf32>
    %17 = arith.mulf %16, %15 : vector<128x128xf32>
    %c0_8 = arith.constant 0 : index
    %c0_9 = arith.constant 0 : index
    %18 = vector.load %arg2[%c0_8, %c0_9] : memref<1x128xf32, #tpu.memory_space<vmem>>, vector<1x128xf32>
    %19 = vector.broadcast %18 : vector<1x128xf32> to vector<128x128xf32>
    %20 = arith.mulf %17, %19 : vector<128x128xf32>
    %c0_10 = arith.constant 0 : index
    %c0_11 = arith.constant 0 : index
    %21 = vector.load %arg3[%c0_10, %c0_11] : memref<1x128xf32, #tpu.memory_space<vmem>>, vector<1x128xf32>
    %22 = vector.broadcast %21 : vector<1x128xf32> to vector<128x128xf32>
    %23 = arith.addf %20, %22 : vector<128x128xf32>
    %c0_12 = arith.constant 0 : index
    %c0_13 = arith.constant 0 : index
    %24 = vector.load %arg5[%c0_12, %c0_13] : memref<128x128xf32, #tpu.memory_space<vmem>>, vector<128x128xf32>
    tpu.vector_store %arg5[%c0_12, %c0_13], %23 {strides = array<i32>} : memref<128x128xf32, #tpu.memory_space<vmem>>, vector<128x128xf32>,
    return
  }
  func.func @transform_0(%arg0: i32) -> (i32, i32) {
    %c0_i32 = arith.constant 0 : i32
    %c0_i32_0 = arith.constant 0 : i32
    return %arg0, %c0_i32 : i32, i32
  }
  func.func @transform_1(%arg0: i32) -> (i32, i32) {
    %c0_i32 = arith.constant 0 : i32
    %c0_i32_0 = arith.constant 0 : i32
    %c0_i32_1 = arith.constant 0 : i32
    return %c0_i32, %c0_i32_0 : i32, i32
  }
  func.func @transform_2(%arg0: i32) -> (i32, i32) {
    %c0_i32 = arith.constant 0 : i32
    %c0_i32_0 = arith.constant 0 : i32
    %c0_i32_1 = arith.constant 0 : i32
    return %c0_i32, %c0_i32_0 : i32, i32
  }
  func.func @transform_3(%arg0: i32) -> (i32, i32) {
    %c0_i32 = arith.constant 0 : i32
    %c0_i32_0 = arith.constant 0 : i32
    %c0_i32_1 = arith.constant 0 : i32
    return %c0_i32, %c0_i32_0 : i32, i32
  }
  func.func @transform_4(%arg0: i32) -> (i32, i32) {
    %c0_i32 = arith.constant 0 : i32
    %c0_i32_0 = arith.constant 0 : i32
    return %arg0, %c0_i32 : i32, i32
  }
}

</mosaic_0001>

<llo_original>
// kernel: tpu_custom_call.1
$region0: #{tpu_custom_call.1}
  #allocation0 [shape = 'u32[]', space=smem, size = 0x4, offset = 0x4, fixed_abs, tag = 'smem constant byte address 0x4 - core index']
  #allocation1 [shape = 'u32[72,128]{1,0:T(1,128)}', space=vmem, size = 0x9000, scoped, tag = 'internal scratch']
  %s0 = inlined_call_operand.hbm [shape: f32[128,128], index: 0, kind: input, shape index: {}]
  %s1 = inlined_call_operand.hbm [shape: f32[1,128], index: 1, kind: input, shape index: {}]
  %s2 = inlined_call_operand.vmem [shape: f32[1,128], index: 2, kind: input, shape index: {}]
  %s3 = inlined_call_operand.hbm [shape: f32[128,128], index: 3, kind: input, shape index: {}]
  %s4 = inlined_call_operand.hbm [shape: f32[128,128], index: 4, kind: output, shape index: {}]
  %s5 = sld [smem:[#allocation0]]
  $region38: #{tpu_custom_call.1} parent=0
    _
  %s7 = ssub.s32 1, %s5
  %s8 = scalar_select 0, %s7, %s5
  $region1: #{tpu_custom_call.1} parent=0
    #allocation2 [shape = 'u8[65536]{0}', space=vmem, size = 0x10000, scoped, tag = 'input window, operand 0, single buffered']
    #allocation3 [shape = 's32[1]{0}', space=sflag, size = 0x4, scoped, tag = 'scoped memory for tpu_custom_call.1']
    #allocation4 [shape = 's32[1]{0}', space=sflag, size = 0x4, scoped, tag = 'scoped memory for tpu_custom_call.1']
    #allocation5 [shape = 'u8[512]{0}', space=vmem, size = 0x400, scoped, tag = 'input window, operand 1, single buffered']
    #allocation6 [shape = 's32[1]{0}', space=sflag, size = 0x4, scoped, tag = 'scoped memory for tpu_custom_call.1']
    #allocation7 [shape = 'u8[65536]{0}', space=vmem, size = 0x10000, scoped, tag = 'input window, operand 3, single buffered']
    #allocation8 [shape = 'u8[65536]{0}', space=vmem, size = 0x10000, scoped, tag = 'output window, operand 0, single buffered']
    %9 = vsyncpa [#allocation3], 0
    %10 = vsyncpa [#allocation6], 0
    %11 = vsyncpa [#allocation4], 0
    // Predicated region
    $region2: #{tpu_custom_call.1} parent=1 // pred_check
      _
    $region3: #{tpu_custom_call.1} parent=1 // pred_check_branch
      %13 = sbr.rel (0) target = $region5
    $region4: #{tpu_custom_call.1} parent=1 // pred_region
      %15 = vsyncadd [#allocation3], 0
      %s16 = sshll.u32 %s0, 4
      %s17 = int_to_ptr.hbm [resolvable:$true] %s16
      %s18 = sshll.u32 [#allocation2], 4
      %s19 = int_to_ptr.vmem [resolvable:$true] %s18
      %24 = dma.hbm_to_vmem [thread:$0]  %s17, 2048, %s19, [#allocation3], 128, 128, 8
    $region5: #{tpu_custom_call.1} parent=1 // pred_fallthru
      _
    // Predicated region
    $region6: #{tpu_custom_call.1} parent=1 // pred_check
      _
    $region7: #{tpu_custom_call.1} parent=1 // pred_check_branch
      %26 = sbr.rel (0) target = $region9
    $region8: #{tpu_custom_call.1} parent=1 // pred_region
      %28 = vsyncadd [#allocation6], 0
      %s30 = sshll.u32 %s1, 4
      %s31 = int_to_ptr.hbm [resolvable:$true] %s30
      %s32 = sshll.u32 [#allocation5], 4
      %s33 = int_to_ptr.vmem [resolvable:$true] %s32
      %35 = dma.hbm_to_vmem [thread:$0]  %s31, 16, %s33, [#allocation6]
    $region9: #{tpu_custom_call.1} parent=1 // pred_fallthru
      _
    // Predicated region
    $region10: #{tpu_custom_call.1} parent=1 // pred_check
      _
    $region11: #{tpu_custom_call.1} parent=1 // pred_check_branch
      %37 = sbr.rel (0) target = $region13
    $region12: #{tpu_custom_call.1} parent=1 // pred_region
      _
    $region13: #{tpu_custom_call.1} parent=1 // pred_fallthru
      _
    // Predicated region
    $region14: #{tpu_custom_call.1} parent=1 // pred_check
      _
    $region15: #{tpu_custom_call.1} parent=1 // pred_check_branch
      %39 = sbr.rel (0) target = $region17
    $region16: #{tpu_custom_call.1} parent=1 // pred_region
      %41 = vsyncadd [#allocation6], 0
      %s42 = sshll.u32 %s3, 4
      %s43 = int_to_ptr.hbm [resolvable:$true] %s42
      %s44 = sshll.u32 [#allocation7], 4
      %s45 = int_to_ptr.vmem [resolvable:$true] %s44
      %50 = dma.hbm_to_vmem [thread:$0]  %s43, 2048, %s45, [#allocation6], 128, 128, 8
    $region17: #{tpu_custom_call.1} parent=1 // pred_fallthru
      _
    // Predicated region
    $region18: #{tpu_custom_call.1} parent=1 // pred_check
      _
    $region19: #{tpu_custom_call.1} parent=1 // pred_check_branch
      %52 = sbr.rel (0) target = $region21
    $region20: #{tpu_custom_call.1} parent=1 // pred_region
      %54 = dma.done [#allocation3], 2048
    $region21: #{tpu_custom_call.1} parent=1 // pred_fallthru
      _
    // Predicated region
    $region22: #{tpu_custom_call.1} parent=1 // pred_check
      _
    $region23: #{tpu_custom_call.1} parent=1 // pred_check_branch
      %56 = sbr.rel (0) target = $region25
    $region24: #{tpu_custom_call.1} parent=1 // pred_region
      %58 = dma.done [#allocation6], 16
    $region25: #{tpu_custom_call.1} parent=1 // pred_fallthru
      _
    // Predicated region
    $region26: #{tpu_custom_call.1} parent=1 // pred_check
      _
    $region27: #{tpu_custom_call.1} parent=1 // pred_check_branch
      %60 = sbr.rel (0) target = $region29
    $region28: #{tpu_custom_call.1} parent=1 // pred_region
      %62 = dma.done [#allocation6], 2048
    $region29: #{tpu_custom_call.1} parent=1 // pred_fallthru
      _
    %v63 = vld [vmem:[#allocation2] sm:$0xff]
    %v64 = vld [vmem:[#allocation2 + $0x8] sm:$0xff]
    %v65 = vld [vmem:[#allocation2 + $0x10] sm:$0xff]
    %v66 = vld [vmem:[#allocation2 + $0x18] sm:$0xff]
    %v67 = vld [vmem:[#allocation2 + $0x20] sm:$0xff]
    %v68 = vld [vmem:[#allocation2 + $0x28] sm:$0xff]
    %v69 = vld [vmem:[#allocation2 + $0x30] sm:$0xff]
    %v70 = vld [vmem:[#allocation2 + $0x38] sm:$0xff]
    %v71 = vld [vmem:[#allocation2 + $0x40] sm:$0xff]
    %v72 = vld [vmem:[#allocation2 + $0x48] sm:$0xff]
    %v73 = vld [vmem:[#allocation2 + $0x50] sm:$0xff]
    %v74 = vld [vmem:[#allocation2 + $0x58] sm:$0xff]
    %v75 = vld [vmem:[#allocation2 + $0x60] sm:$0xff]
    %v76 = vld [vmem:[#allocation2 + $0x68] sm:$0xff]
    %v77 = vld [vmem:[#allocation2 + $0x70] sm:$0xff]
    %v78 = vld [vmem:[#allocation2 + $0x78] sm:$0xff]
    %v79 = vld [vmem:[#allocation7] sm:$0xff]
    %v80 = vld [vmem:[#allocation7 + $0x8] sm:$0xff]
    %v81 = vld [vmem:[#allocation7 + $0x10] sm:$0xff]
    %v82 = vld [vmem:[#allocation7 + $0x18] sm:$0xff]
    %v83 = vld [vmem:[#allocation7 + $0x20] sm:$0xff]
    %v84 = vld [vmem:[#allocation7 + $0x28] sm:$0xff]
    %v85 = vld [vmem:[#allocation7 + $0x30] sm:$0xff]
    %v86 = vld [vmem:[#allocation7 + $0x38] sm:$0xff]
    %v87 = vld [vmem:[#allocation7 + $0x40] sm:$0xff]
    %v88 = vld [vmem:[#allocation7 + $0x48] sm:$0xff]
    %v89 = vld [vmem:[#allocation7 + $0x50] sm:$0xff]
    %v90 = vld [vmem:[#allocation7 + $0x58] sm:$0xff]
    %v91 = vld [vmem:[#allocation7 + $0x60] sm:$0xff]
    %v92 = vld [vmem:[#allocation7 + $0x68] sm:$0xff]
    %v93 = vld [vmem:[#allocation7 + $0x70] sm:$0xff]
    %v94 = vld [vmem:[#allocation7 + $0x78] sm:$0xff]
    %95 = vmatpush.msra.mxu0 %v94
    %96 = vmatpush.msra.mxu0 %v93
    %97 = vmatpush.msra.mxu0 %v92
    %98 = vmatpush.msra.mxu0 %v91
    %99 = vmatpush.msra.mxu0 %v90
    %100 = vmatpush.msra.mxu0 %v89
    %101 = vmatpush.msra.mxu0 %v88
    %102 = vmatpush.msra.mxu0 %v87
    %103 = vmatpush.msra.mxu0 %v86
    %104 = vmatpush.msra.mxu0 %v85
    %105 = vmatpush.msra.mxu0 %v84
    %106 = vmatpush.msra.mxu0 %v83
    %107 = vmatpush.msra.mxu0 %v82
    %108 = vmatpush.msra.mxu0 %v81
    %109 = vmatpush.msra.mxu0 %v80
    %110 = vmatpush.msra.mxu0 %v79
    %111 = vmatmul.f32.gmra.mxu0 %v63
    %v112 = vpop.f32.mrf.mxu0
    %v113 = vadd.f32 0.0, %v112
    %114 = vmatmul.f32.gmra.mxu0 %v64
    %v115 = vpop.f32.mrf.mxu0
    %v116 = vadd.f32 0.0, %v115
    %117 = vmatmul.f32.gmra.mxu0 %v65
    %v118 = vpop.f32.mrf.mxu0
    %v119 = vadd.f32 0.0, %v118
    %120 = vmatmul.f32.gmra.mxu0 %v66
    %v121 = vpop.f32.mrf.mxu0
    %v122 = vadd.f32 0.0, %v121
    %123 = vmatmul.f32.gmra.mxu0 %v67
    %v124 = vpop.f32.mrf.mxu0
    %v125 = vadd.f32 0.0, %v124
    %126 = vmatmul.f32.gmra.mxu0 %v68
    %v127 = vpop.f32.mrf.mxu0
    %v128 = vadd.f32 0.0, %v127
    %129 = vmatmul.f32.gmra.mxu0 %v69
    %v130 = vpop.f32.mrf.mxu0
    %v131 = vadd.f32 0.0, %v130
    %132 = vmatmul.f32.gmra.mxu0 %v70
    %v133 = vpop.f32.mrf.mxu0
    %v134 = vadd.f32 0.0, %v133
    %135 = vmatmul.f32.gmra.mxu0 %v71
    %v136 = vpop.f32.mrf.mxu0
    %v137 = vadd.f32 0.0, %v136
    %138 = vmatmul.f32.gmra.mxu0 %v72
    %v139 = vpop.f32.mrf.mxu0
    %v140 = vadd.f32 0.0, %v139
    %141 = vmatmul.f32.gmra.mxu0 %v73
    %v142 = vpop.f32.mrf.mxu0
    %v143 = vadd.f32 0.0, %v142
    %144 = vmatmul.f32.gmra.mxu0 %v74
    %v145 = vpop.f32.mrf.mxu0
    %v146 = vadd.f32 0.0, %v145
    %147 = vmatmul.f32.gmra.mxu0 %v75
    %v148 = vpop.f32.mrf.mxu0
    %v149 = vadd.f32 0.0, %v148
    %150 = vmatmul.f32.gmra.mxu0 %v76
    %v151 = vpop.f32.mrf.mxu0
    %v152 = vadd.f32 0.0, %v151
    %153 = vmatmul.f32.gmra.mxu0 %v77
    %v154 = vpop.f32.mrf.mxu0
    %v155 = vadd.f32 0.0, %v154
    %156 = vmatmul.f32.gmra.mxu0 %v78
    %v157 = vpop.f32.mrf.mxu0
    %v158 = vadd.f32 0.0, %v157
    %159 = vdwg.mxu0
    %v160 = vmul.f32 %v63, %v63
    %v161 = vmul.f32 %v64, %v64
    %v162 = vmul.f32 %v65, %v65
    %v163 = vmul.f32 %v66, %v66
    %v164 = vmul.f32 %v67, %v67
    %v165 = vmul.f32 %v68, %v68
    %v166 = vmul.f32 %v69, %v69
    %v167 = vmul.f32 %v70, %v70
    %v168 = vmul.f32 %v71, %v71
    %v169 = vmul.f32 %v72, %v72
    %v170 = vmul.f32 %v73, %v73
    %v171 = vmul.f32 %v74, %v74
    %v172 = vmul.f32 %v75, %v75
    %v173 = vmul.f32 %v76, %v76
    %v174 = vmul.f32 %v77, %v77
    %v175 = vmul.f32 %v78, %v78
    %176 = vmatpush.msra.mxu0 %v94
    %177 = vmatpush.msra.mxu0 %v93
    %178 = vmatpush.msra.mxu0 %v92
    %179 = vmatpush.msra.mxu0 %v91
    %180 = vmatpush.msra.mxu0 %v90
    %181 = vmatpush.msra.mxu0 %v89
    %182 = vmatpush.msra.mxu0 %v88
    %183 = vmatpush.msra.mxu0 %v87
    %184 = vmatpush.msra.mxu0 %v86
    %185 = vmatpush.msra.mxu0 %v85
    %186 = vmatpush.msra.mxu0 %v84
    %187 = vmatpush.msra.mxu0 %v83
    %188 = vmatpush.msra.mxu0 %v82
    %189 = vmatpush.msra.mxu0 %v81
    %190 = vmatpush.msra.mxu0 %v80
    %191 = vmatpush.msra.mxu0 %v79
    %192 = vmatmul.f32.gmra.mxu0 %v160
    %v193 = vpop.f32.mrf.mxu0
    %v194 = vadd.f32 0.0, %v193
    %195 = vmatmul.f32.gmra.mxu0 %v161
    %v196 = vpop.f32.mrf.mxu0
    %v197 = vadd.f32 0.0, %v196
    %198 = vmatmul.f32.gmra.mxu0 %v162
    %v199 = vpop.f32.mrf.mxu0
    %v200 = vadd.f32 0.0, %v199
    %201 = vmatmul.f32.gmra.mxu0 %v163
    %v202 = vpop.f32.mrf.mxu0
    %v203 = vadd.f32 0.0, %v202
    %204 = vmatmul.f32.gmra.mxu0 %v164
    %v205 = vpop.f32.mrf.mxu0
    %v206 = vadd.f32 0.0, %v205
    %207 = vmatmul.f32.gmra.mxu0 %v165
    %v208 = vpop.f32.mrf.mxu0
    %v209 = vadd.f32 0.0, %v208
    %210 = vmatmul.f32.gmra.mxu0 %v166
    %v211 = vpop.f32.mrf.mxu0
    %v212 = vadd.f32 0.0, %v211
    %213 = vmatmul.f32.gmra.mxu0 %v167
    %v214 = vpop.f32.mrf.mxu0
    %v215 = vadd.f32 0.0, %v214
    %216 = vmatmul.f32.gmra.mxu0 %v168
    %v217 = vpop.f32.mrf.mxu0
    %v218 = vadd.f32 0.0, %v217
    %219 = vmatmul.f32.gmra.mxu0 %v169
    %v220 = vpop.f32.mrf.mxu0
    %v221 = vadd.f32 0.0, %v220
    %222 = vmatmul.f32.gmra.mxu0 %v170
    %v223 = vpop.f32.mrf.mxu0
    %v224 = vadd.f32 0.0, %v223
    %225 = vmatmul.f32.gmra.mxu0 %v171
    %v226 = vpop.f32.mrf.mxu0
    %v227 = vadd.f32 0.0, %v226
    %228 = vmatmul.f32.gmra.mxu0 %v172
    %v229 = vpop.f32.mrf.mxu0
    %v230 = vadd.f32 0.0, %v229
    %231 = vmatmul.f32.gmra.mxu0 %v173
    %v232 = vpop.f32.mrf.mxu0
    %v233 = vadd.f32 0.0, %v232
    %234 = vmatmul.f32.gmra.mxu0 %v174
    %v235 = vpop.f32.mrf.mxu0
    %v236 = vadd.f32 0.0, %v235
    %237 = vmatmul.f32.gmra.mxu0 %v175
    %v238 = vpop.f32.mrf.mxu0
    %v239 = vadd.f32 0.0, %v238
    %240 = vdwg.mxu0
    %v241 = vmul.f32 %v113, 0.03125
    %v242 = vmul.f32 %v116, 0.03125
    %v243 = vmul.f32 %v119, 0.03125
    %v244 = vmul.f32 %v122, 0.03125
    %v245 = vmul.f32 %v125, 0.03125
    %v246 = vmul.f32 %v128, 0.03125
    %v247 = vmul.f32 %v131, 0.03125
    %v248 = vmul.f32 %v134, 0.03125
    %v249 = vmul.f32 %v137, 0.03125
    %v250 = vmul.f32 %v140, 0.03125
    %v251 = vmul.f32 %v143, 0.03125
    %v252 = vmul.f32 %v146, 0.03125
    %v253 = vmul.f32 %v149, 0.03125
    %v254 = vmul.f32 %v152, 0.03125
    %v255 = vmul.f32 %v155, 0.03125
    %v256 = vmul.f32 %v158, 0.03125
    %v257 = vmul.f32 %v194, 0.03125
    %v258 = vmul.f32 %v197, 0.03125
    %v259 = vmul.f32 %v200, 0.03125
    %v260 = vmul.f32 %v203, 0.03125
    %v261 = vmul.f32 %v206, 0.03125
    %v262 = vmul.f32 %v209, 0.03125
    %v263 = vmul.f32 %v212, 0.03125
    %v264 = vmul.f32 %v215, 0.03125
    %v265 = vmul.f32 %v218, 0.03125
    %v266 = vmul.f32 %v221, 0.03125
    %v267 = vmul.f32 %v224, 0.03125
    %v268 = vmul.f32 %v227, 0.03125
    %v269 = vmul.f32 %v230, 0.03125
    %v270 = vmul.f32 %v233, 0.03125
    %v271 = vmul.f32 %v236, 0.03125
    %v272 = vmul.f32 %v239, 0.03125
    %v273 = vmul.f32 %v241, %v241
    %v274 = vmul.f32 %v242, %v242
    %v275 = vmul.f32 %v243, %v243
    %v276 = vmul.f32 %v244, %v244
    %v277 = vmul.f32 %v245, %v245
    %v278 = vmul.f32 %v246, %v246
    %v279 = vmul.f32 %v247, %v247
    %v280 = vmul.f32 %v248, %v248
    %v281 = vmul.f32 %v249, %v249
    %v282 = vmul.f32 %v250, %v250
    %v283 = vmul.f32 %v251, %v251
    %v284 = vmul.f32 %v252, %v252
    %v285 = vmul.f32 %v253, %v253
    %v286 = vmul.f32 %v254, %v254
    %v287 = vmul.f32 %v255, %v255
    %v288 = vmul.f32 %v256, %v256
    %v289 = vsub.f32 %v257, %v273
    %v290 = vsub.f32 %v258, %v274
    %v291 = vsub.f32 %v259, %v275
    %v292 = vsub.f32 %v260, %v276
    %v293 = vsub.f32 %v261, %v277
    %v294 = vsub.f32 %v262, %v278
    %v295 = vsub.f32 %v263, %v279
    %v296 = vsub.f32 %v264, %v280
    %v297 = vsub.f32 %v265, %v281
    %v298 = vsub.f32 %v266, %v282
    %v299 = vsub.f32 %v267, %v283
    %v300 = vsub.f32 %v268, %v284
    %v301 = vsub.f32 %v269, %v285
    %v302 = vsub.f32 %v270, %v286
    %v303 = vsub.f32 %v271, %v287
    %v304 = vsub.f32 %v272, %v288
    %v305 = vmax.f32 %v289, 0.0
    %v306 = vmax.f32 %v290, 0.0
    %v307 = vmax.f32 %v291, 0.0
    %v308 = vmax.f32 %v292, 0.0
    %v309 = vmax.f32 %v293, 0.0
    %v310 = vmax.f32 %v294, 0.0
    %v311 = vmax.f32 %v295, 0.0
    %v312 = vmax.f32 %v296, 0.0
    %v313 = vmax.f32 %v297, 0.0
    %v314 = vmax.f32 %v298, 0.0
    %v315 = vmax.f32 %v299, 0.0
    %v316 = vmax.f32 %v300, 0.0
    %v317 = vmax.f32 %v301, 0.0
    %v318 = vmax.f32 %v302, 0.0
    %v319 = vmax.f32 %v303, 0.0
    %v320 = vmax.f32 %v304, 0.0
    %v321 = vadd.f32 %v305, 1e-05
    %v322 = vadd.f32 %v306, 1e-05
    %v323 = vadd.f32 %v307, 1e-05
    %v324 = vadd.f32 %v308, 1e-05
    %v325 = vadd.f32 %v309, 1e-05
    %v326 = vadd.f32 %v310, 1e-05
    %v327 = vadd.f32 %v311, 1e-05
    %v328 = vadd.f32 %v312, 1e-05
    %v329 = vadd.f32 %v313, 1e-05
    %v330 = vadd.f32 %v314, 1e-05
    %v331 = vadd.f32 %v315, 1e-05
    %v332 = vadd.f32 %v316, 1e-05
    %v333 = vadd.f32 %v317, 1e-05
    %v334 = vadd.f32 %v318, 1e-05
    %v335 = vadd.f32 %v319, 1e-05
    %v336 = vadd.f32 %v320, 1e-05
    %v337 = vrsqrt.pop %v321
    %v338 = vmul.f32 %v337, %v321
    %v339 = vmul.f32 %v338, %v337
    %v340 = vmul.f32 0.5, %v339
    %v341 = vsub.f32 1.5, %v340
    %v342 = vmul.f32 %v337, %v341
    %vm343 = vweird.f32 %v321
    %vm344 = vweird.f32 %v337
    %vm345 = vmor %vm343, %vm344
    %v346 = vsel %vm345, %v337, %v342
    %v347 = vrsqrt.pop %v322
    %v348 = vmul.f32 %v347, %v322
    %v349 = vmul.f32 %v348, %v347
    %v350 = vmul.f32 0.5, %v349
    %v351 = vsub.f32 1.5, %v350
    %v352 = vmul.f32 %v347, %v351
    %vm353 = vweird.f32 %v322
    %vm354 = vweird.f32 %v347
    %vm355 = vmor %vm353, %vm354
    %v356 = vsel %vm355, %v347, %v352
    %v357 = vrsqrt.pop %v323
    %v358 = vmul.f32 %v357, %v323
    %v359 = vmul.f32 %v358, %v357
    %v360 = vmul.f32 0.5, %v359
    %v361 = vsub.f32 1.5, %v360
    %v362 = vmul.f32 %v357, %v361
    %vm363 = vweird.f32 %v323
    %vm364 = vweird.f32 %v357
    %vm365 = vmor %vm363, %vm364
    %v366 = vsel %vm365, %v357, %v362
    %v367 = vrsqrt.pop %v324
    %v368 = vmul.f32 %v367, %v324
    %v369 = vmul.f32 %v368, %v367
    %v370 = vmul.f32 0.5, %v369
    %v371 = vsub.f32 1.5, %v370
    %v372 = vmul.f32 %v367, %v371
    %vm373 = vweird.f32 %v324
    %vm374 = vweird.f32 %v367
    %vm375 = vmor %vm373, %vm374
    %v376 = vsel %vm375, %v367, %v372
    %v377 = vrsqrt.pop %v325
    %v378 = vmul.f32 %v377, %v325
    %v379 = vmul.f32 %v378, %v377
    %v380 = vmul.f32 0.5, %v379
    %v381 = vsub.f32 1.5, %v380
    %v382 = vmul.f32 %v377, %v381
    %vm383 = vweird.f32 %v325
    %vm384 = vweird.f32 %v377
    %vm385 = vmor %vm383, %vm384
    %v386 = vsel %vm385, %v377, %v382
    %v387 = vrsqrt.pop %v326
    %v388 = vmul.f32 %v387, %v326
    %v389 = vmul.f32 %v388, %v387
    %v390 = vmul.f32 0.5, %v389
    %v391 = vsub.f32 1.5, %v390
    %v392 = vmul.f32 %v387, %v391
    %vm393 = vweird.f32 %v326
    %vm394 = vweird.f32 %v387
    %vm395 = vmor %vm393, %vm394
    %v396 = vsel %vm395, %v387, %v392
    %v397 = vrsqrt.pop %v327
    %v398 = vmul.f32 %v397, %v327
    %v399 = vmul.f32 %v398, %v397
    %v400 = vmul.f32 0.5, %v399
    %v401 = vsub.f32 1.5, %v400
    %v402 = vmul.f32 %v397, %v401
    %vm403 = vweird.f32 %v327
    %vm404 = vweird.f32 %v397
    %vm405 = vmor %vm403, %vm404
    %v406 = vsel %vm405, %v397, %v402
    %v407 = vrsqrt.pop %v328
    %v408 = vmul.f32 %v407, %v328
    %v409 = vmul.f32 %v408, %v407
    %v410 = vmul.f32 0.5, %v409
    %v411 = vsub.f32 1.5, %v410
    %v412 = vmul.f32 %v407, %v411
    %vm413 = vweird.f32 %v328
    %vm414 = vweird.f32 %v407
    %vm415 = vmor %vm413, %vm414
    %v416 = vsel %vm415, %v407, %v412
    %v417 = vrsqrt.pop %v329
    %v418 = vmul.f32 %v417, %v329
    %v419 = vmul.f32 %v418, %v417
    %v420 = vmul.f32 0.5, %v419
    %v421 = vsub.f32 1.5, %v420
    %v422 = vmul.f32 %v417, %v421
    %vm423 = vweird.f32 %v329
    %vm424 = vweird.f32 %v417
    %vm425 = vmor %vm423, %vm424
    %v426 = vsel %vm425, %v417, %v422
    %v427 = vrsqrt.pop %v330
    %v428 = vmul.f32 %v427, %v330
    %v429 = vmul.f32 %v428, %v427
    %v430 = vmul.f32 0.5, %v429
    %v431 = vsub.f32 1.5, %v430
    %v432 = vmul.f32 %v427, %v431
    %vm433 = vweird.f32 %v330
    %vm434 = vweird.f32 %v427
    %vm435 = vmor %vm433, %vm434
    %v436 = vsel %vm435, %v427, %v432
    %v437 = vrsqrt.pop %v331
    %v438 = vmul.f32 %v437, %v331
    %v439 = vmul.f32 %v438, %v437
    %v440 = vmul.f32 0.5, %v439
    %v441 = vsub.f32 1.5, %v440
    %v442 = vmul.f32 %v437, %v441
    %vm443 = vweird.f32 %v331
    %vm444 = vweird.f32 %v437
    %vm445 = vmor %vm443, %vm444
    %v446 = vsel %vm445, %v437, %v442
    %v447 = vrsqrt.pop %v332
    %v448 = vmul.f32 %v447, %v332
    %v449 = vmul.f32 %v448, %v447
    %v450 = vmul.f32 0.5, %v449
    %v451 = vsub.f32 1.5, %v450
    %v452 = vmul.f32 %v447, %v451
    %vm453 = vweird.f32 %v332
    %vm454 = vweird.f32 %v447
    %vm455 = vmor %vm453, %vm454
    %v456 = vsel %vm455, %v447, %v452
    %v457 = vrsqrt.pop %v333
    %v458 = vmul.f32 %v457, %v333
    %v459 = vmul.f32 %v458, %v457
    %v460 = vmul.f32 0.5, %v459
    %v461 = vsub.f32 1.5, %v460
    %v462 = vmul.f32 %v457, %v461
    %vm463 = vweird.f32 %v333
    %vm464 = vweird.f32 %v457
    %vm465 = vmor %vm463, %vm464
    %v466 = vsel %vm465, %v457, %v462
    %v467 = vrsqrt.pop %v334
    %v468 = vmul.f32 %v467, %v334
    %v469 = vmul.f32 %v468, %v467
    %v470 = vmul.f32 0.5, %v469
    %v471 = vsub.f32 1.5, %v470
    %v472 = vmul.f32 %v467, %v471
    %vm473 = vweird.f32 %v334
    %vm474 = vweird.f32 %v467
    %vm475 = vmor %vm473, %vm474
    %v476 = vsel %vm475, %v467, %v472
    %v477 = vrsqrt.pop %v335
    %v478 = vmul.f32 %v477, %v335
    %v479 = vmul.f32 %v478, %v477
    %v480 = vmul.f32 0.5, %v479
    %v481 = vsub.f32 1.5, %v480
    %v482 = vmul.f32 %v477, %v481
    %vm483 = vweird.f32 %v335
    %vm484 = vweird.f32 %v477
    %vm485 = vmor %vm483, %vm484
    %v486 = vsel %vm485, %v477, %v482
    %v487 = vrsqrt.pop %v336
    %v488 = vmul.f32 %v487, %v336
    %v489 = vmul.f32 %v488, %v487
    %v490 = vmul.f32 0.5, %v489
    %v491 = vsub.f32 1.5, %v490
    %v492 = vmul.f32 %v487, %v491
    %vm493 = vweird.f32 %v336
    %vm494 = vweird.f32 %v487
    %vm495 = vmor %vm493, %vm494
    %v496 = vsel %vm495, %v487, %v492
    %v497 = vsub.f32 %v63, %v241
    %v498 = vsub.f32 %v64, %v242
    %v499 = vsub.f32 %v65, %v243
    %v500 = vsub.f32 %v66, %v244
    %v501 = vsub.f32 %v67, %v245
    %v502 = vsub.f32 %v68, %v246
    %v503 = vsub.f32 %v69, %v247
    %v504 = vsub.f32 %v70, %v248
    %v505 = vsub.f32 %v71, %v249
    %v506 = vsub.f32 %v72, %v250
    %v507 = vsub.f32 %v73, %v251
    %v508 = vsub.f32 %v74, %v252
    %v509 = vsub.f32 %v75, %v253
    %v510 = vsub.f32 %v76, %v254
    %v511 = vsub.f32 %v77, %v255
    %v512 = vsub.f32 %v78, %v256
    %v513 = vmul.f32 %v497, %v346
    %v514 = vmul.f32 %v498, %v356
    %v515 = vmul.f32 %v499, %v366
    %v516 = vmul.f32 %v500, %v376
    %v517 = vmul.f32 %v501, %v386
    %v518 = vmul.f32 %v502, %v396
    %v519 = vmul.f32 %v503, %v406
    %v520 = vmul.f32 %v504, %v416
    %v521 = vmul.f32 %v505, %v426
    %v522 = vmul.f32 %v506, %v436
    %v523 = vmul.f32 %v507, %v446
    %v524 = vmul.f32 %v508, %v456
    %v525 = vmul.f32 %v509, %v466
    %v526 = vmul.f32 %v510, %v476
    %v527 = vmul.f32 %v511, %v486
    %v528 = vmul.f32 %v512, %v496
    %v529 = vld [vmem:[#allocation5] sm:$0x1]
    %v531 = vperm.slane %v529, 0
    %v533 = vmul.f32 %v513, %v531
    %v534 = vmul.f32 %v514, %v531
    %v535 = vmul.f32 %v515, %v531
    %v536 = vmul.f32 %v516, %v531
    %v537 = vmul.f32 %v517, %v531
    %v538 = vmul.f32 %v518, %v531
    %v539 = vmul.f32 %v519, %v531
    %v540 = vmul.f32 %v520, %v531
    %v541 = vmul.f32 %v521, %v531
    %v542 = vmul.f32 %v522, %v531
    %v543 = vmul.f32 %v523, %v531
    %v544 = vmul.f32 %v524, %v531
    %v545 = vmul.f32 %v525, %v531
    %v546 = vmul.f32 %v526, %v531
    %v547 = vmul.f32 %v527, %v531
    %v548 = vmul.f32 %v528, %v531
    %v549 = vld [vmem:[%s2] sm:$0x1]
    %v551 = vperm.slane %v549, 0
    %v553 = vadd.f32 %v533, %v551
    %v554 = vadd.f32 %v534, %v551
    %v555 = vadd.f32 %v535, %v551
    %v556 = vadd.f32 %v536, %v551
    %v557 = vadd.f32 %v537, %v551
    %v558 = vadd.f32 %v538, %v551
    %v559 = vadd.f32 %v539, %v551
    %v560 = vadd.f32 %v540, %v551
    %v561 = vadd.f32 %v541, %v551
    %v562 = vadd.f32 %v542, %v551
    %v563 = vadd.f32 %v543, %v551
    %v564 = vadd.f32 %v544, %v551
    %v565 = vadd.f32 %v545, %v551
    %v566 = vadd.f32 %v546, %v551
    %v567 = vadd.f32 %v547, %v551
    %v568 = vadd.f32 %v548, %v551
    %569 = vst [vmem:[#allocation8] sm:$0xff] %v553
    %570 = vst [vmem:[#allocation8 + $0x8] sm:$0xff] %v554
    %571 = vst [vmem:[#allocation8 + $0x10] sm:$0xff] %v555
    %572 = vst [vmem:[#allocation8 + $0x18] sm:$0xff] %v556
    %573 = vst [vmem:[#allocation8 + $0x20] sm:$0xff] %v557
    %574 = vst [vmem:[#allocation8 + $0x28] sm:$0xff] %v558
    %575 = vst [vmem:[#allocation8 + $0x30] sm:$0xff] %v559
    %576 = vst [vmem:[#allocation8 + $0x38] sm:$0xff] %v560
    %577 = vst [vmem:[#allocation8 + $0x40] sm:$0xff] %v561
    %578 = vst [vmem:[#allocation8 + $0x48] sm:$0xff] %v562
    %579 = vst [vmem:[#allocation8 + $0x50] sm:$0xff] %v563
    %580 = vst [vmem:[#allocation8 + $0x58] sm:$0xff] %v564
    %581 = vst [vmem:[#allocation8 + $0x60] sm:$0xff] %v565
    %582 = vst [vmem:[#allocation8 + $0x68] sm:$0xff] %v566
    %583 = vst [vmem:[#allocation8 + $0x70] sm:$0xff] %v567
    %584 = vst [vmem:[#allocation8 + $0x78] sm:$0xff] %v568
    // Predicated region
    $region30: #{tpu_custom_call.1} parent=1 // pred_check
      _
    $region31: #{tpu_custom_call.1} parent=1 // pred_check_branch
      %586 = sbr.rel (0) target = $region33
    $region32: #{tpu_custom_call.1} parent=1 // pred_region
      %588 = vsyncadd [#allocation4], 0
      %s589 = sshll.u32 [#allocation8], 4
      %s590 = int_to_ptr.vmem [resolvable:$true] %s589
      %s591 = sshll.u32 %s4, 4
      %s592 = int_to_ptr.hbm [resolvable:$true] %s591
      %597 = dma.vmem_to_hbm [thread:$0]  %s590, 2048, %s592, [#allocation4], 128, 128, 8
    $region33: #{tpu_custom_call.1} parent=1 // pred_fallthru
      _
    // Predicated region
    $region34: #{tpu_custom_call.1} parent=1 // pred_check
      _
    $region35: #{tpu_custom_call.1} parent=1 // pred_check_branch
      %599 = sbr.rel (0) target = $region37
    $region36: #{tpu_custom_call.1} parent=1 // pred_region
      %601 = dma.done [#allocation4], 2048
    $region37: #{tpu_custom_call.1} parent=1 // pred_fallthru
      _
    %602 = vsyncpa [#allocation3], 1
    %603 = vsyncpa [#allocation6], 1
    %604 = vsyncpa [#allocation4], 1

</llo_original>
